<compile_context>
chip_gen: v7x
topology: tpu7x:2x2x1
jax: 0.10.0
libtpu: 0.0.40
codegen_flags: <defaults>
</compile_context>

<pallas_src>
import jax
import jax.numpy as jnp
import numpy as np
from jax.experimental import pallas as pl
from jax.experimental.pallas import tpu as pltpu

# ----------------------------- loss hyper-params -----------------------------
CATEGORY_WEIGHT = 1.0
CATEGORY_TYPE_WEIGHT = 0.5
ATTRIBUTE_WEIGHT = 0.3
COMPATIBILITY_WEIGHT = 0.2
LABEL_SMOOTHING = 0.1

_LANE = 128
_SUBLANE = 8
_NCORES = 2          # leading "parallel" grid axis (2 TensorCores on v7x)


def _cdiv(a, b):
    return -(-a // b)


def _round_up(n, m):
    return ((n + m - 1) // m) * m


def _make_kernel(*, B, TB, C1, C2, lanes, nb_per_core,
                 off_ap, off_at, off_ct, off_cl, off_tl, shift, eps):
    """Build the multitask-loss kernel closed over static layout constants."""
    one_m_eps = 1.0 - eps

    def kernel(packed_ref, out_ref, acc_ref):
        c = pl.program_id(0)                 # core-split axis ("parallel")
        i = pl.program_id(1)                 # batch-tile axis ("arbitrary")
        nb = pl.num_programs(1)

        # ------------- init the per-core lane-parallel accumulator ----------
        @pl.when(i == 0)
        def _init():
            acc_ref[...] = jnp.zeros_like(acc_ref)

        x = packed_ref[...]                                  # (TB, lanes) f32

        lane = jax.lax.broadcasted_iota(jnp.int32, (TB, lanes), 1)
        is_cat = lane < C1
        is_type = (lane >= C1) & (lane < off_ap)
        is_head = lane < off_ap
        is_at = (lane >= off_at) & (lane < off_ct)           # attr-target lanes
        is_ct = (lane >= off_ct) & (lane < off_cl)           # comp-target lanes
        is_lse = (lane == off_cl) | (lane == off_tl)

        # ---------- per-row segment softmax stats (cross-lane reduces) ------
        neg = jnp.float32(-3.4e38)
        m1 = jnp.max(jnp.where(is_cat, x, neg), axis=-1, keepdims=True)
        m2 = jnp.max(jnp.where(is_type, x, neg), axis=-1, keepdims=True)
        z = x - jnp.where(is_cat, m1, m2)
        # NOTE: exp(z) on non-head lanes (labels/preds/pad) may overflow to
        # +inf; this is safe ONLY because jnp.where SELECTS.  Do not refactor
        # into a multiply-by-mask form.
        e = jnp.where(is_head, jnp.exp(z), 0.0)              # EUP pass #1
        s1 = jnp.sum(jnp.where(is_cat, e, 0.0), axis=-1, keepdims=True)
        s2 = jnp.sum(jnp.where(is_type, e, 0.0), axis=-1, keepdims=True)

        # single aligned roll: preds land on their matching target lanes
        xr = pltpu.roll(x, shift=shift, axis=1)

        # ---------- ONE full-width log pass (EUP pass #2) --------------------
        # attr-pred lanes: p (from x)          -> log(p)
        # attr-target lanes: 1 - p (from roll) -> log(1-p)
        # label lanes: s1 / s2                 -> lse1 / lse2
        logv = jnp.where(is_at, 1.0 - xr, x)
        logv = jnp.where(lane == off_cl, s1, logv)
        logv = jnp.where(lane == off_tl, s2, logv)
        # PyTorch BCE clamp; s1,s2 >= 1 so the lse lanes are unaffected.
        lg = jnp.maximum(jnp.log(logv), -100.0)
        lgr = pltpu.roll(lg, shift=shift, axis=1)            # log(p) at target lanes

        # ---------- label-smoothed CE contributions (fully lane-parallel) ----
        # per-row CE = lse - (1-eps)*z_true - (eps/C)*sum_seg(z); the z terms
        # are accumulated per lane, the lse terms via the label lanes of lg.
        cat_lab = x[:, off_cl:off_cl + 1].astype(jnp.int32)  # exact f32 round-trip
        type_lab = x[:, off_tl:off_tl + 1].astype(jnp.int32)
        sel = (lane == cat_lab) | (lane == (type_lab + C1))
        coeff = jnp.where(is_cat, eps / C1, jnp.where(is_type, eps / C2, 0.0))
        coeff = jnp.where(sel, coeff + one_m_eps, coeff)
        contrib = -coeff * z                                 # only head lanes nonzero

        # ---------- BCE (attr-target lanes) & MSE (comp-target lanes) --------
        t = x                                                # targets at their lanes
        bce = -(t * lgr + (1.0 - t) * lg)                    # valid at attr-target lanes
        d = xr - x                                           # score - target at ct lanes
        contrib = jnp.where(is_at, bce, contrib)
        contrib = jnp.where(is_ct, d * d, contrib)
        contrib = jnp.where(is_lse, lg, contrib)             # lse1 / lse2 per row

        # ---------- mask padded rows, per-lane partial sums ------------------
        base = (c * nb_per_core + i) * TB
        row = jax.lax.broadcasted_iota(jnp.int32, (TB, 1), 0) + base
        contrib = jnp.where(row < B, contrib, 0.0)
        acc_ref[...] += jnp.sum(contrib, axis=0, keepdims=True)

        # ---------- finalize: one lane-dense (8, lanes) block per core -------
        @pl.when(i == nb - 1)
        def _finalize():
            sub = jax.lax.broadcasted_iota(jnp.int32, (_SUBLANE, lanes), 0)
            out_ref[...] = jnp.where(sub == 0, acc_ref[...], 0.0)

    return kernel


def fashion_multitask_loss(outputs, targets, *, tile_rows=2048):
    """Pallas implementation of FashionMultiTaskLoss.forward.

    Returns (total_loss, loss_details_dict).
    """
    cat_logits = jnp.asarray(outputs['category_logits'], jnp.float32)
    type_logits = jnp.asarray(outputs['category_type_logits'], jnp.float32)
    attr_p = jnp.asarray(outputs['attribute_preds'], jnp.float32)
    attr_t = jnp.asarray(targets['attribute_targets'], jnp.float32)

    B, C1 = cat_logits.shape
    C2 = type_logits.shape[1]
    A = attr_p.shape[1]

    comp_s = jnp.asarray(outputs['compatibility_score'], jnp.float32).reshape(B, -1)
    comp_t = jnp.asarray(targets['compatibility_targets'], jnp.float32).reshape(B, -1)
    CW = comp_s.shape[1]

    cat_lab = jnp.asarray(targets['category_labels'], jnp.int32).reshape(B, 1)
    type_lab = jnp.asarray(targets['category_type_labels'], jnp.int32).reshape(B, 1)

    # ---- layout: preds and their targets exactly `shift` lanes apart --------
    off_ap = C1 + C2                 # attr preds
    off_cs = off_ap + A              # compatibility score
    off_at = off_cs + CW             # attr targets   (= off_ap + shift)
    off_ct = off_at + A              # comp targets   (= off_cs + shift)
    off_cl = off_ct + CW             # category label (float lane)
    off_tl = off_cl + 1              # type label     (float lane)
    width = off_tl + 1
    shift = A + CW
    lanes = _round_up(width, _LANE)

    # big batch tiles (<= tile_rows) to amortize per-grid-step overhead;
    # split evenly across the 2-way core axis when the batch is small.
    TB = max(_SUBLANE, min(_round_up(_cdiv(B, _NCORES), _SUBLANE),
                           _round_up(tile_rows, _SUBLANE)))
    nb_per_core = _cdiv(_cdiv(B, TB), _NCORES)
    Bp = _NCORES * nb_per_core * TB

    # TODO(synk): the concatenate+pad is still one extra (non-overlapped) HBM
    # pass over the inputs; feeding the heads as separate lane-dense Pallas
    # inputs (labels as an int32 side input) would remove it at the cost of
    # per-head DMAs and losing the single merged exp/log pass.
    pieces = [cat_logits, type_logits, attr_p, comp_s, attr_t, comp_t,
              cat_lab.astype(jnp.float32), type_lab.astype(jnp.float32)]
    packed = jnp.concatenate(pieces, axis=1)
    packed = jnp.pad(packed, ((0, Bp - B), (0, lanes - width)))

    kernel = _make_kernel(B=B, TB=TB, C1=C1, C2=C2, lanes=lanes,
                          nb_per_core=nb_per_core,
                          off_ap=off_ap, off_at=off_at, off_ct=off_ct,
                          off_cl=off_cl, off_tl=off_tl, shift=shift,
                          eps=LABEL_SMOOTHING)

    out = pl.pallas_call(
        kernel,
        out_shape=jax.ShapeDtypeStruct((_NCORES * _SUBLANE, lanes), jnp.float32),
        grid_spec=pltpu.PrefetchScalarGridSpec(
            num_scalar_prefetch=0,
            grid=(_NCORES, nb_per_core),
            in_specs=[pl.BlockSpec((TB, lanes),
                                   lambda c, i: (c * nb_per_core + i, 0))],
            out_specs=pl.BlockSpec((_SUBLANE, lanes), lambda c, i: (c, 0)),
            scratch_shapes=[pltpu.VMEM((1, lanes), jnp.float32)],
        ),
        compiler_params=pltpu.CompilerParams(
            dimension_semantics=("parallel", "arbitrary"),
            vmem_limit_bytes=32 * 1024 * 1024,
        ),
    )(packed)

    # ---- tiny wrapper epilogue: combine per-core / per-lane partial sums ----
    per_lane = jnp.sum(out, axis=0)                          # (lanes,)
    cat_sum = jnp.sum(per_lane[:C1]) + per_lane[off_cl]      # z-terms + sum(lse1)
    type_sum = jnp.sum(per_lane[C1:off_ap]) + per_lane[off_tl]
    attr_sum = jnp.sum(per_lane[off_at:off_ct])
    comp_sum = jnp.sum(per_lane[off_ct:off_cl])

    cat_loss = cat_sum / B
    type_loss = type_sum / B
    attr_loss = attr_sum / (B * A)
    comp_loss = comp_sum / (B * CW)
    total = (CATEGORY_WEIGHT * cat_loss
             + CATEGORY_TYPE_WEIGHT * type_loss
             + ATTRIBUTE_WEIGHT * attr_loss
             + COMPATIBILITY_WEIGHT * comp_loss)

    # TODO(synk): the PyTorch module returns a sparser dict 90% of the time
    # (host-side random.random() branch + .item() calls); the loss value is
    # identical, so we always return the full detail dict here.
    details = {
        'total': total,
        'category': cat_loss,
        'category_type': type_loss,
        'attribute': attr_loss,
        'compatibility': comp_loss,
    }
    return total, details


# ------------------------------ pure-JAX reference ---------------------------
def _reference(outputs, targets):
    def ce(logits, labels, eps):
        logits = logits.astype(jnp.float32)
        logp = jax.nn.log_softmax(logits, axis=-1)
        B, C = logits.shape
        nll_true = -logp[jnp.arange(B), labels]
        nll_all = -jnp.sum(logp, axis=-1)
        return jnp.mean((1 - eps) * nll_true + (eps / C) * nll_all)

    cat = ce(outputs['category_logits'], targets['category_labels'], LABEL_SMOOTHING)
    typ = ce(outputs['category_type_logits'], targets['category_type_labels'], LABEL_SMOOTHING)
    p = outputs['attribute_preds']
    t = targets['attribute_targets']
    bce = jnp.mean(-(t * jnp.maximum(jnp.log(p), -100.0)
                     + (1 - t) * jnp.maximum(jnp.log(1 - p), -100.0)))
    mse = jnp.mean((outputs['compatibility_score'] - targets['compatibility_targets']) ** 2)
    total = (CATEGORY_WEIGHT * cat + CATEGORY_TYPE_WEIGHT * typ
             + ATTRIBUTE_WEIGHT * bce + COMPATIBILITY_WEIGHT * mse)
    return total, cat, typ, bce, mse


if __name__ == "__main__":
    B, NUM_CATEGORIES, NUM_TYPES, NUM_ATTRS = 8, 16, 8, 32

    key = jax.random.PRNGKey(0)
    k = jax.random.split(key, 8)

    outputs = {
        'category_logits': jax.random.normal(k[0], (B, NUM_CATEGORIES), jnp.float32),
        'category_type_logits': jax.random.normal(k[1], (B, NUM_TYPES), jnp.float32),
        'attribute_preds': jax.nn.sigmoid(jax.random.normal(k[2], (B, NUM_ATTRS), jnp.float32)),
        'compatibility_score': jax.nn.sigmoid(jax.random.normal(k[3], (B, 1), jnp.float32)),
    }
    targets = {
        'category_labels': jax.random.randint(k[4], (B,), 0, NUM_CATEGORIES, jnp.int32),
        'category_type_labels': jax.random.randint(k[5], (B,), 0, NUM_TYPES, jnp.int32),
        'attribute_targets': jax.random.bernoulli(k[6], 0.3, (B, NUM_ATTRS)).astype(jnp.float32),
        'compatibility_targets': jax.random.uniform(k[7], (B, 1), jnp.float32),
    }

    total, details = fashion_multitask_loss(outputs, targets)
    total = jax.block_until_ready(total)

    ref_total, ref_cat, ref_typ, ref_bce, ref_mse = _reference(outputs, targets)
    np.testing.assert_allclose(np.asarray(total), np.asarray(ref_total), rtol=1e-5, atol=1e-5)
    np.testing.assert_allclose(np.asarray(details['category']), np.asarray(ref_cat), rtol=1e-5, atol=1e-5)
    np.testing.assert_allclose(np.asarray(details['category_type']), np.asarray(ref_typ), rtol=1e-5, atol=1e-5)
    np.testing.assert_allclose(np.asarray(details['attribute']), np.asarray(ref_bce), rtol=1e-5, atol=1e-5)
    np.testing.assert_allclose(np.asarray(details['compatibility']), np.asarray(ref_mse), rtol=1e-5, atol=1e-5)

    print("KERNEL_OK")
</pallas_src>

<mosaic_0001>
module attributes {stable_mosaic.version = 11 : i64} {
  func.func @kernel(%arg0: i32, %arg1: i32, %arg2: memref<8x128xf32, #tpu.memory_space<vmem>>, %arg3: memref<8x128xf32, #tpu.memory_space<vmem>>, %arg4: memref<1x128xf32, #tpu.memory_space<vmem>>) attributes {dimension_semantics = [#tpu.dimension_semantics<parallel>, #tpu.dimension_semantics<arbitrary>], iteration_bounds = array<i64: 2, 1>, scalar_prefetch = 0 : i64, scratch_operands = 1 : i64, tpu.core_type = #tpu.core_type<tc>, window_params = [{transform_indices = @transform_0, window_bounds = array<i64: 8, 128>}, {transform_indices = @transform_1, window_bounds = array<i64: 8, 128>}]} {
    %c0_i32 = arith.constant 0 : i32
    %0 = arith.cmpi eq, %arg1, %c0_i32 : i32
    %1 = arith.extui %0 : i1 to i32
    %c0_i32_0 = arith.constant 0 : i32
    %2 = arith.cmpi ne, %1, %c0_i32_0 : i32
    scf.if %2 {
      %cst_36 = arith.constant 0.000000e+00 : f32
      %126 = vector.broadcast %cst_36 : f32 to vector<1x128xf32>
      %c0_37 = arith.constant 0 : index
      %c0_38 = arith.constant 0 : index
      %127 = vector.load %arg4[%c0_37, %c0_38] : memref<1x128xf32, #tpu.memory_space<vmem>>, vector<1x128xf32>
      tpu.vector_store %arg4[%c0_37, %c0_38], %126 {strides = array<i32>} : memref<1x128xf32, #tpu.memory_space<vmem>>, vector<1x128xf32>,
    } else {
    }
    %c0 = arith.constant 0 : index
    %c0_1 = arith.constant 0 : index
    %3 = vector.load %arg2[%c0, %c0_1] : memref<8x128xf32, #tpu.memory_space<vmem>>, vector<8x128xf32>
    %4 = tpu.iota {dimensions = array<i32: 1>} : vector<8x128xi32>
    %c16_i32 = arith.constant 16 : i32
    %5 = vector.broadcast %c16_i32 : i32 to vector<8x128xi32>
    %6 = arith.cmpi slt, %4, %5 : vector<8x128xi32>
    %c16_i32_2 = arith.constant 16 : i32
    %7 = vector.broadcast %c16_i32_2 : i32 to vector<8x128xi32>
    %8 = arith.cmpi sge, %4, %7 : vector<8x128xi32>
    %c24_i32 = arith.constant 24 : i32
    %9 = vector.broadcast %c24_i32 : i32 to vector<8x128xi32>
    %10 = arith.cmpi slt, %4, %9 : vector<8x128xi32>
    %11 = arith.andi %8, %10 : vector<8x128xi1>
    %c24_i32_3 = arith.constant 24 : i32
    %12 = vector.broadcast %c24_i32_3 : i32 to vector<8x128xi32>
    %13 = arith.cmpi slt, %4, %12 : vector<8x128xi32>
    %c57_i32 = arith.constant 57 : i32
    %14 = vector.broadcast %c57_i32 : i32 to vector<8x128xi32>
    %15 = arith.cmpi sge, %4, %14 : vector<8x128xi32>
    %c89_i32 = arith.constant 89 : i32
    %16 = vector.broadcast %c89_i32 : i32 to vector<8x128xi32>
    %17 = arith.cmpi slt, %4, %16 : vector<8x128xi32>
    %18 = arith.andi %15, %17 : vector<8x128xi1>
    %c89_i32_4 = arith.constant 89 : i32
    %19 = vector.broadcast %c89_i32_4 : i32 to vector<8x128xi32>
    %20 = arith.cmpi sge, %4, %19 : vector<8x128xi32>
    %c90_i32 = arith.constant 90 : i32
    %21 = vector.broadcast %c90_i32 : i32 to vector<8x128xi32>
    %22 = arith.cmpi slt, %4, %21 : vector<8x128xi32>
    %23 = arith.andi %20, %22 : vector<8x128xi1>
    %c90_i32_5 = arith.constant 90 : i32
    %24 = vector.broadcast %c90_i32_5 : i32 to vector<8x128xi32>
    %25 = arith.cmpi eq, %4, %24 : vector<8x128xi32>
    %c91_i32 = arith.constant 91 : i32
    %26 = vector.broadcast %c91_i32 : i32 to vector<8x128xi32>
    %27 = arith.cmpi eq, %4, %26 : vector<8x128xi32>
    %28 = arith.ori %25, %27 : vector<8x128xi1>
    %cst = arith.constant -3.400000e+38 : f32
    %29 = vector.broadcast %cst : f32 to vector<8x128xf32>
    %30 = arith.select %6, %3, %29 : vector<8x128xi1>, vector<8x128xf32>
    %cst_6 = arith.constant dense<0xFF800000> : vector<8xf32>
    %31 = vector.multi_reduction <maximumf>, %30, %cst_6 [1] : vector<8x128xf32> to vector<8xf32>
    %32 = vector.shape_cast %31 : vector<8xf32> to vector<8x1xf32>
    %cst_7 = arith.constant -3.400000e+38 : f32
    %33 = vector.broadcast %cst_7 : f32 to vector<8x128xf32>
    %34 = arith.select %11, %3, %33 : vector<8x128xi1>, vector<8x128xf32>
    %cst_8 = arith.constant dense<0xFF800000> : vector<8xf32>
    %35 = vector.multi_reduction <maximumf>, %34, %cst_8 [1] : vector<8x128xf32> to vector<8xf32>
    %36 = vector.shape_cast %35 : vector<8xf32> to vector<8x1xf32>
    %37 = vector.shape_cast %32 : vector<8x1xf32> to vector<8x1xf32>
    %38 = vector.broadcast %37 : vector<8x1xf32> to vector<8x128xf32>
    %39 = vector.shape_cast %36 : vector<8x1xf32> to vector<8x1xf32>
    %40 = vector.broadcast %39 : vector<8x1xf32> to vector<8x128xf32>
    %41 = arith.select %6, %38, %40 : vector<8x128xi1>, vector<8x128xf32>
    %42 = arith.subf %3, %41 : vector<8x128xf32>
    %43 = math.exp %42 : vector<8x128xf32>
    %cst_9 = arith.constant 0.000000e+00 : f32
    %44 = vector.broadcast %cst_9 : f32 to vector<8x128xf32>
    %45 = arith.select %13, %43, %44 : vector<8x128xi1>, vector<8x128xf32>
    %cst_10 = arith.constant 0.000000e+00 : f32
    %46 = vector.broadcast %cst_10 : f32 to vector<8x128xf32>
    %47 = arith.select %6, %45, %46 : vector<8x128xi1>, vector<8x128xf32>
    %cst_11 = arith.constant dense<0.000000e+00> : vector<8xf32>
    %48 = vector.multi_reduction <add>, %47, %cst_11 [1] : vector<8x128xf32> to vector<8xf32>
    %49 = vector.shape_cast %48 : vector<8xf32> to vector<8x1xf32>
    %cst_12 = arith.constant 0.000000e+00 : f32
    %50 = vector.broadcast %cst_12 : f32 to vector<8x128xf32>
    %51 = arith.select %11, %45, %50 : vector<8x128xi1>, vector<8x128xf32>
    %cst_13 = arith.constant dense<0.000000e+00> : vector<8xf32>
    %52 = vector.multi_reduction <add>, %51, %cst_13 [1] : vector<8x128xf32> to vector<8xf32>
    %53 = vector.shape_cast %52 : vector<8xf32> to vector<8x1xf32>
    %c33_i32 = arith.constant 33 : i32
    %54 = tpu.dynamic_rotate %3 by %c33_i32 dim 1 : vector<8x128xf32>, i32 -> vector<8x128xf32>
    %cst_14 = arith.constant 1.000000e+00 : f32
    %55 = vector.broadcast %cst_14 : f32 to vector<8x128xf32>
    %56 = arith.subf %55, %54 : vector<8x128xf32>
    %57 = arith.select %18, %56, %3 : vector<8x128xi1>, vector<8x128xf32>
    %c90_i32_15 = arith.constant 90 : i32
    %58 = vector.broadcast %c90_i32_15 : i32 to vector<8x128xi32>
    %59 = arith.cmpi eq, %4, %58 : vector<8x128xi32>
    %60 = vector.shape_cast %49 : vector<8x1xf32> to vector<8x1xf32>
    %61 = vector.broadcast %60 : vector<8x1xf32> to vector<8x128xf32>
    %62 = arith.select %59, %61, %57 : vector<8x128xi1>, vector<8x128xf32>
    %c91_i32_16 = arith.constant 91 : i32
    %63 = vector.broadcast %c91_i32_16 : i32 to vector<8x128xi32>
    %64 = arith.cmpi eq, %4, %63 : vector<8x128xi32>
    %65 = vector.shape_cast %53 : vector<8x1xf32> to vector<8x1xf32>
    %66 = vector.broadcast %65 : vector<8x1xf32> to vector<8x128xf32>
    %67 = arith.select %64, %66, %62 : vector<8x128xi1>, vector<8x128xf32>
    %68 = math.log %67 : vector<8x128xf32>
    %cst_17 = arith.constant -1.000000e+02 : f32
    %69 = vector.broadcast %cst_17 : f32 to vector<8x128xf32>
    %70 = arith.maximumf %68, %69 : vector<8x128xf32>
    %c33_i32_18 = arith.constant 33 : i32
    %71 = tpu.dynamic_rotate %70 by %c33_i32_18 dim 1 : vector<8x128xf32>, i32 -> vector<8x128xf32>
    %72 = vector.extract_strided_slice %3 {offsets = [0, 90], sizes = [8, 1], strides = [1, 1]} : vector<8x128xf32> to vector<8x1xf32>
    %73 = arith.fptosi %72 : vector<8x1xf32> to vector<8x1xi32>
    %74 = vector.extract_strided_slice %3 {offsets = [0, 91], sizes = [8, 1], strides = [1, 1]} : vector<8x128xf32> to vector<8x1xf32>
    %75 = arith.fptosi %74 : vector<8x1xf32> to vector<8x1xi32>
    %76 = vector.broadcast %73 : vector<8x1xi32> to vector<8x128xi32>
    %77 = arith.cmpi eq, %4, %76 : vector<8x128xi32>
    %c16_i32_19 = arith.constant 16 : i32
    %78 = vector.broadcast %c16_i32_19 : i32 to vector<8x1xi32>
    %79 = arith.addi %75, %78 : vector<8x1xi32>
    %80 = vector.broadcast %79 : vector<8x1xi32> to vector<8x128xi32>
    %81 = arith.cmpi eq, %4, %80 : vector<8x128xi32>
    %82 = arith.ori %77, %81 : vector<8x128xi1>
    %cst_20 = arith.constant 1.250000e-02 : f32
    %cst_21 = arith.constant 0.000000e+00 : f32
    %83 = vector.broadcast %cst_20 : f32 to vector<8x128xf32>
    %84 = vector.broadcast %cst_21 : f32 to vector<8x128xf32>
    %85 = arith.select %11, %83, %84 : vector<8x128xi1>, vector<8x128xf32>
    %cst_22 = arith.constant 6.250000e-03 : f32
    %86 = vector.broadcast %cst_22 : f32 to vector<8x128xf32>
    %87 = arith.select %6, %86, %85 : vector<8x128xi1>, vector<8x128xf32>
    %cst_23 = arith.constant 0.899999976 : f32
    %88 = vector.broadcast %cst_23 : f32 to vector<8x128xf32>
    %89 = arith.addf %87, %88 : vector<8x128xf32>
    %90 = arith.select %82, %89, %87 : vector<8x128xi1>, vector<8x128xf32>
    %cst_24 = arith.constant 0.000000e+00 : f32
    %91 = vector.broadcast %cst_24 : f32 to vector<8x128xf32>
    %92 = arith.subf %91, %90 : vector<8x128xf32>
    %93 = arith.mulf %92, %42 : vector<8x128xf32>
    %94 = arith.mulf %3, %71 : vector<8x128xf32>
    %cst_25 = arith.constant 1.000000e+00 : f32
    %95 = vector.broadcast %cst_25 : f32 to vector<8x128xf32>
    %96 = arith.subf %95, %3 : vector<8x128xf32>
    %97 = arith.mulf %96, %70 : vector<8x128xf32>
    %98 = arith.addf %94, %97 : vector<8x128xf32>
    %cst_26 = arith.constant 0.000000e+00 : f32
    %99 = vector.broadcast %cst_26 : f32 to vector<8x128xf32>
    %100 = arith.subf %99, %98 : vector<8x128xf32>
    %101 = arith.subf %54, %3 : vector<8x128xf32>
    %102 = arith.select %18, %100, %93 : vector<8x128xi1>, vector<8x128xf32>
    %103 = arith.mulf %101, %101 : vector<8x128xf32>
    %104 = arith.select %23, %103, %102 : vector<8x128xi1>, vector<8x128xf32>
    %105 = arith.select %28, %70, %104 : vector<8x128xi1>, vector<8x128xf32>
    %c1_i32 = arith.constant 1 : i32
    %106 = arith.muli %arg0, %c1_i32 : i32
    %107 = arith.addi %106, %arg1 : i32
    %c8_i32 = arith.constant 8 : i32
    %108 = arith.muli %107, %c8_i32 : i32
    %109 = tpu.iota {dimensions = array<i32: 0>} : vector<8x1xi32>
    %110 = vector.broadcast %108 : i32 to vector<8x1xi32>
    %111 = arith.addi %109, %110 : vector<8x1xi32>
    %c8_i32_27 = arith.constant 8 : i32
    %112 = vector.broadcast %c8_i32_27 : i32 to vector<8x1xi32>
    %113 = arith.cmpi slt, %111, %112 : vector<8x1xi32>
    %cst_28 = arith.constant 0.000000e+00 : f32
    %114 = vector.shape_cast %113 : vector<8x1xi1> to vector<8x1xi1>
    %115 = vector.broadcast %114 : vector<8x1xi1> to vector<8x128xi1>
    %116 = vector.broadcast %cst_28 : f32 to vector<8x128xf32>
    %117 = arith.select %115, %105, %116 : vector<8x128xi1>, vector<8x128xf32>
    %c0_29 = arith.constant 0 : index
    %c0_30 = arith.constant 0 : index
    %118 = vector.load %arg4[%c0_29, %c0_30] : memref<1x128xf32, #tpu.memory_space<vmem>>, vector<1x128xf32>
    %cst_31 = arith.constant dense<0.000000e+00> : vector<128xf32>
    %119 = vector.multi_reduction <add>, %117, %cst_31 [0] : vector<8x128xf32> to vector<128xf32>
    %120 = vector.shape_cast %119 : vector<128xf32> to vector<1x128xf32>
    %121 = arith.addf %118, %120 : vector<1x128xf32>
    %c0_32 = arith.constant 0 : index
    %c0_33 = arith.constant 0 : index
    %122 = vector.load %arg4[%c0_32, %c0_33] : memref<1x128xf32, #tpu.memory_space<vmem>>, vector<1x128xf32>
    tpu.vector_store %arg4[%c0_32, %c0_33], %121 {strides = array<i32>} : memref<1x128xf32, #tpu.memory_space<vmem>>, vector<1x128xf32>,
    %c0_i32_34 = arith.constant 0 : i32
    %123 = arith.cmpi eq, %arg1, %c0_i32_34 : i32
    %124 = arith.extui %123 : i1 to i32
    %c0_i32_35 = arith.constant 0 : i32
    %125 = arith.cmpi ne, %124, %c0_i32_35 : i32
    scf.if %125 {
      %126 = tpu.iota {dimensions = array<i32: 0>} : vector<8x128xi32>
      %c0_i32_36 = arith.constant 0 : i32
      %127 = vector.broadcast %c0_i32_36 : i32 to vector<8x128xi32>
      %128 = arith.cmpi eq, %126, %127 : vector<8x128xi32>
      %c0_37 = arith.constant 0 : index
      %c0_38 = arith.constant 0 : index
      %129 = vector.load %arg4[%c0_37, %c0_38] : memref<1x128xf32, #tpu.memory_space<vmem>>, vector<1x128xf32>
      %cst_39 = arith.constant 0.000000e+00 : f32
      %130 = vector.shape_cast %129 : vector<1x128xf32> to vector<1x128xf32>
      %131 = vector.broadcast %130 : vector<1x128xf32> to vector<8x128xf32>
      %132 = vector.broadcast %cst_39 : f32 to vector<8x128xf32>
      %133 = arith.select %128, %131, %132 : vector<8x128xi1>, vector<8x128xf32>
      %c0_40 = arith.constant 0 : index
      %c0_41 = arith.constant 0 : index
      %134 = vector.load %arg3[%c0_40, %c0_41] : memref<8x128xf32, #tpu.memory_space<vmem>>, vector<8x128xf32>
      tpu.vector_store %arg3[%c0_40, %c0_41], %133 {strides = array<i32>} : memref<8x128xf32, #tpu.memory_space<vmem>>, vector<8x128xf32>,
    } else {
    }
    return
  }
  func.func @transform_0(%arg0: i32, %arg1: i32) -> (i32, i32) {
    %c1_i32 = arith.constant 1 : i32
    %0 = arith.muli %arg0, %c1_i32 : i32
    %1 = arith.addi %0, %arg1 : i32
    %c0_i32 = arith.constant 0 : i32
    %c0_i32_0 = arith.constant 0 : i32
    return %1, %c0_i32 : i32, i32
  }
  func.func @transform_1(%arg0: i32, %arg1: i32) -> (i32, i32) {
    %c0_i32 = arith.constant 0 : i32
    %c0_i32_0 = arith.constant 0 : i32
    return %arg0, %c0_i32 : i32, i32
  }
}

</mosaic_0001>

<llo_original>
// kernel: tpu_custom_call.1
$region0: #{tpu_custom_call.1}
  #allocation0 [shape = 'u32[]', space=smem, size = 0x4, offset = 0x4, fixed_abs, tag = 'smem constant byte address 0x4 - core index']
  #allocation1 [shape = 'u32[144,128]{1,0:T(1,128)}', space=vmem, size = 0x12000, scoped, tag = 'internal scratch']
  #allocation2 [shape = 'f32[1,128]{1,0:T(1,128)}', space=vmem, size = 0x200, scoped, tag = 'scratch operand']
  %s0 = inlined_call_operand.hbm [shape: f32[16,128], index: 0, kind: input, shape index: {}]
  %s1 = inlined_call_operand.hbm [shape: f32[16,128], index: 1, kind: output, shape index: {}]
  %s2 = sld [smem:[#allocation0]]
  $region49: #{tpu_custom_call.1} parent=0
    _
  %s4 = ssub.s32 1, %s2
  %s5 = scalar_select 0, %s4, %s2
  $region1: #{tpu_custom_call.1} parent=0
    #allocation3 [shape = 'u8[8192]{0}', space=vmem, size = 0x2000, scoped, tag = 'input window, operand 0']
    #allocation4 [shape = 's32[2]{0}', space=sflag, size = 0x8, scoped, tag = 'scoped memory for tpu_custom_call.1']
    #allocation5 [shape = 's32[2]{0}', space=sflag, size = 0x8, scoped, tag = 'scoped memory for tpu_custom_call.1']
    #allocation6 [shape = 'u8[8192]{0}', space=vmem, size = 0x2000, scoped, tag = 'output window, operand 0']
    %6 = vsyncpa [#allocation4], 0
    %s7 = scalar_lea.sflag [#allocation4], 1
    %8 = vsyncpa %s7, 0
    %9 = vsyncpa [#allocation5], 0
    %s10 = scalar_lea.sflag [#allocation5], 1
    %11 = vsyncpa %s10, 0
    loop: start=0, step=1, limit=4
    $region2: #{tpu_custom_call.1} parent=1 // loop_pre_header
      _
    $region3: #{tpu_custom_call.1} parent=1 // loop_header
      %s13 = sphi 0, %s17
      %p14 = scmp.ge.s32.totalorder %s13, 4
      %s20 = sphi 0, %s32
      %s21 = sphi 0, %s28
      %s22 = sphi 0, %s20
      %s23 = sphi 0, %s21
      %s24 = sphi 0, %s22
      %s25 = sphi 0, %s23
      %s37 = sphi 0, %s39
      %s40 = sphi 0, %s37
      %s41 = sphi 0, %s40
      %s57 = sphi 0, %s41
      %s63 = sphi 0, %s65
      %s66 = sphi 0, %s63
      %s67 = sphi 0, %s66
      %s83 = sphi 0, %s67
    $region4: #{tpu_custom_call.1} parent=1 // loop_header_branch
      %16 = sbr.rel (%p14) target = $region8
    $region5: #{tpu_custom_call.1} parent=1 // loop_body
      %s18 = ssub.s32 %s13, 1
      %s19 = ssub.s32 %s13, 2
      %s26 = sadd.s32 1, %s21
      %p27 = scmp.ge.s32.totalorder %s26, 1
      %s28 = scalar_select %p27, 0, %s26
      %s29 = sadd.s32 1, %s20
      %s30 = scalar_select %p27, %s29, %s20
      %p31 = scmp.ge.s32.totalorder %s30, 2
      %s32 = scalar_select %p31, 0, %s30
      %s33 = sadd.s32 %s20, %s21
      %s34 = sadd.s32 %s32, %s28
      %s35 = ssub.s32 %s33, %s34
      %p36 = scmp.eq.s32.totalorder %s35, 0
      %s38 = sadd.s32 %s37, 1
      %s39 = scalar_select %p36, %s37, %s38
      %p42 = pneg %p36
      %p43 = scmp.eq.s32.totalorder %s13, 1
      %p44 = por %p42, %p43
      %p45 = scmp.ne.s32.totalorder %s37, %s40
      %p46 = scmp.eq.s32.totalorder %s13, 0
      %p47 = por %p45, %p46
      %p48 = scmp.ne.s32.totalorder %s37, %s40
      %p49 = scmp.eq.s32.totalorder %s18, 1
      %p50 = por %p48, %p49
      %p51 = scmp.ne.s32.totalorder %s40, %s41
      %p52 = scmp.eq.s32.totalorder %s18, 0
      %p53 = por %p51, %p52
      %p54 = scmp.ne.s32.totalorder %s40, %s41
      %p55 = scmp.eq.s32.totalorder %s19, 1
      %p56 = por %p54, %p55
      %p58 = scmp.ne.s32.totalorder %s41, %s57
      %p59 = scmp.eq.s32.totalorder %s19, 0
      %p60 = por %p58, %p59
      %s61 = ssub.s32 %s20, %s32
      %p62 = scmp.eq.s32.totalorder %s61, 0
      %s64 = sadd.s32 %s63, 1
      %s65 = scalar_select %p62, %s63, %s64
      %p68 = pneg %p62
      %p69 = scmp.eq.s32.totalorder %s13, 1
      %p70 = por %p68, %p69
      %p71 = scmp.ne.s32.totalorder %s63, %s66
      %p72 = scmp.eq.s32.totalorder %s13, 0
      %p73 = por %p71, %p72
      %p74 = scmp.ne.s32.totalorder %s63, %s66
      %p75 = scmp.eq.s32.totalorder %s18, 1
      %p76 = por %p74, %p75
      %p77 = scmp.ne.s32.totalorder %s66, %s67
      %p78 = scmp.eq.s32.totalorder %s18, 0
      %p79 = por %p77, %p78
      %p80 = scmp.ne.s32.totalorder %s66, %s67
      %p81 = scmp.eq.s32.totalorder %s19, 1
      %p82 = por %p80, %p81
      %p84 = scmp.ne.s32.totalorder %s67, %s83
      %p85 = scmp.eq.s32.totalorder %s19, 0
      %p86 = por %p84, %p85
      %p87 = scmp.le.s32.totalorder 1, %s13
      %p88 = scmp.lt.s32.totalorder %s13, 3
      %p89 = pnand %p87, %p88
      %p90 = pneg %p89
      // Predicated region
      $region9: #{tpu_custom_call.1} parent=5 // pred_check
        _
      $region10: #{tpu_custom_call.1} parent=5 // pred_check_branch
        %92 = sbr.rel (%p89) target = $region12
      $region11: #{tpu_custom_call.1} parent=5 // pred_region
        %s93 = ssub.s32 %s13, 1
      $region12: #{tpu_custom_call.1} parent=5 // pred_fallthru
        _
      %p94 = scmp.lt.s32.totalorder %s13, 2
      // Predicated region
      $region13: #{tpu_custom_call.1} parent=5 // pred_check
        %p95 = pneg %p94
      $region14: #{tpu_custom_call.1} parent=5 // pred_check_branch
        %97 = sbr.rel (%p95) target = $region16
      $region15: #{tpu_custom_call.1} parent=5 // pred_region
        // Predicated region
        $region17: #{tpu_custom_call.1} parent=15 // pred_check
          %p98 = pneg %p47
        $region18: #{tpu_custom_call.1} parent=15 // pred_check_branch
          %100 = sbr.rel (%p98) target = $region20
        $region19: #{tpu_custom_call.1} parent=15 // pred_region
          %s101 = sand.u32 %s37, 1
          %s102 = scalar_lea.sflag [#allocation4], %s101
          %s103 = sand.u32 %s37, 1
          %s104 = smul.addr %s103, 8
          %s105 = scalar_lea.vmem [#allocation3], %s104
          %s106 = sadd.s32 %s20, %s21
          %s108 = ssub.s32 128, 128
          %109 = vsyncadd %s102, %s108
          %s110 = smul.addr %s106, 128
          %s111 = scalar_lea.hbm %s0, %s110
          %s113 = sshll.u32 %s105, 4
          %s114 = int_to_ptr.vmem [resolvable:$true] %s113
          %116 = dma.hbm_to_vmem [thread:$0]  %s111, 128, %s114, %s102
        $region20: #{tpu_custom_call.1} parent=15 // pred_fallthru
          _
      $region16: #{tpu_custom_call.1} parent=5 // pred_fallthru
        _
      %p117 = scmp.le.s32.totalorder 1, %s13
      %p118 = scmp.lt.s32.totalorder %s13, 3
      %p119 = pnand %p117, %p118
      %p120 = pneg %p119
      // Predicated region
      $region21: #{tpu_custom_call.1} parent=5 // pred_check
        _
      $region22: #{tpu_custom_call.1} parent=5 // pred_check_branch
        %122 = sbr.rel (%p119) target = $region24
      $region23: #{tpu_custom_call.1} parent=5 // pred_region
        %s123 = ssub.s32 %s13, 1
        %s124 = sand.u32 %s40, 1
        %s125 = scalar_lea.sflag [#allocation4], %s124
        %s126 = sand.u32 %s40, 1
        %s127 = smul.addr %s126, 8
        %s128 = scalar_lea.vmem [#allocation3], %s127
        // Predicated region
        $region25: #{tpu_custom_call.1} parent=23 // pred_check
          %p129 = pneg %p53
        $region26: #{tpu_custom_call.1} parent=23 // pred_check_branch
          %131 = sbr.rel (%p129) target = $region28
        $region27: #{tpu_custom_call.1} parent=23 // pred_region
          %132 = dma.done %s125, 128
        $region28: #{tpu_custom_call.1} parent=23 // pred_fallthru
          _
        %s133 = sand.u32 %s40, 1
        %s134 = scalar_lea.sflag [#allocation4], %s133
        %s135 = sand.u32 %s40, 1
        %s136 = smul.addr %s135, 8
        %s137 = scalar_lea.vmem [#allocation3], %s136
        %p138 = pneg %p53
        %p139 = pneg %p50
        %p140 = pneg %p79
        %p141 = pneg %p76
        %s142 = sand.u32 %s66, 1
        %s143 = scalar_lea.sflag [#allocation5], %s142
        %s144 = sand.u32 %s66, 1
        %s145 = smul.addr %s144, 8
        %s146 = scalar_lea.vmem [#allocation6], %s145
        %s147 = sadd.s32 %s22, %s23
        %p148 = scmp.eq.s32.totalorder %s23, 0
        // Predicated region
        $region29: #{tpu_custom_call.1} parent=23 // pred_check
          %p149 = pneg %p148
        $region30: #{tpu_custom_call.1} parent=23 // pred_check_branch
          %151 = sbr.rel (%p149) target = $region32
        $region31: #{tpu_custom_call.1} parent=23 // pred_region
          %152 = vst [vmem:[#allocation2] sm:$0x1] 0.0
        $region32: #{tpu_custom_call.1} parent=23 // pred_fallthru
          _
        %v153 = vld [vmem:[%s128] sm:$0xff]
        %v154 = vlaneseq
        %v155 = vand.u32 %v154, 127
        %vm156 = vcmp.lt.s32.totalorder %v155, 16
        %vm157 = vcmp.ge.s32.totalorder %v155, 16
        %vm158 = vcmp.lt.s32.totalorder %v155, 24
        %vm159 = vmand %vm157, %vm158
        %vm160 = vcmp.ge.s32.totalorder %v155, 57
        %vm161 = vcmp.lt.s32.totalorder %v155, 89
        %vm162 = vmand %vm160, %vm161
        %vm163 = vcmp.ge.s32.totalorder %v155, 89
        %vm164 = vcmp.lt.s32.totalorder %v155, 90
        %vm165 = vmand %vm163, %vm164
        %vm166 = vcmp.eq.s32.totalorder %v155, 90
        %vm167 = vcmp.eq.s32.totalorder %v155, 91
        %vm168 = vmor %vm166, %vm167
        %v169 = vsel %vm156, %v153, -3.4e+38
        %170 = vmax.xlane.f32.xlu0 %v169
        %v171 = vpop.xlane.xlu0 %170
        %v172 = vsel %vm159, %v153, -3.4e+38
        %173 = vmax.xlane.f32.xlu0 %v172
        %v174 = vpop.xlane.xlu0 %173
        %v175 = vsel %vm156, %v171, %v174
        %v176 = vsub.f32 %v153, %v175
        %v177 = vmul.f32 %v176, 1.442695
        %v178 = vpow.pop %v177
        %v179 = vsel %vm158, %v178, 0.0
        %v180 = vsel %vm156, %v179, 0.0
        %181 = vadd.xlane.f32.xlu0 %v180
        %v182 = vpop.xlane.xlu0 %181
        %v183 = vsel %vm159, %v179, 0.0
        %184 = vadd.xlane.f32.xlu0 %v183
        %v185 = vpop.xlane.xlu0 %184
        %186 = vrot.lane.b32.xlu0 %v153, 33
        %v187 = vpop.permute.xlu0 %186
        %v188 = vsub.f32 1.0, %v187
        %v189 = vsel %vm162, %v188, %v153
        %v190 = vsel %vm166, %v182, %v189
        %v191 = vsel %vm167, %v185, %v190
        %v192 = vlog2.pop %v191
        %v193 = vmul.f32 %v192, 0.6931472
        %v194 = vmax.f32 %v193, -100.0
        %195 = vrot.lane.b32.xlu0 %v194, 33
        %v196 = vpop.permute.xlu0 %195
        %v197 = vcvt.f32.s32.to.zero.pseudo %v153
        %198 = vset.pattern.permute.xlu0 90
        %199 = vperm.xlu0 %198, %v197
        %v200 = vpop.permute.xlu0 %199
        %vm201 = vcmp.eq.s32.totalorder %v155, %v200
        %v202 = vadd.s32 %v197, 16
        %203 = vset.pattern.permute.xlu0 91
        %204 = vperm.xlu0 %203, %v202
        %v205 = vpop.permute.xlu0 %204
        %vm206 = vcmp.eq.s32.totalorder %v155, %v205
        %vm207 = vmor %vm201, %vm206
        %v208 = vsel %vm159, 0.0125, 0.0
        %v209 = vsel %vm156, 0.00625, %v208
        %v210 = vadd.f32 %v209, 0.9
        %v211 = vsel %vm207, %v210, %v209
        %v212 = vsub.f32 0.0, %v211
        %v213 = vmul.f32 %v212, %v176
        %v214 = vmul.f32 %v153, %v196
        %v215 = vsub.f32 1.0, %v153
        %v216 = vmul.f32 %v215, %v194
        %v217 = vadd.f32 %v214, %v216
        %v218 = vsub.f32 0.0, %v217
        %v219 = vsub.f32 %v187, %v153
        %v220 = vsel %vm162, %v218, %v213
        %v221 = vmul.f32 %v219, %v219
        %v222 = vsel %vm165, %v221, %v220
        %v223 = vsel %vm168, %v194, %v222
        %s224 = sadd.s32 %s22, %s23
        %s225 = smul.u32 %s224, 8
        %v226 = vlaneseq
        %v227 = vshrl.u32 %v226, 7
        %v228 = vstv %s225
        %v229 = vadd.s32 %v227, %v228
        %vm230 = vcmp.lt.s32.totalorder %v229, 8
        %v231 = vsel %vm230, 1, 0
        %vm232 = vcmp.eq.s32.totalorder %v231, 1
        %v233 = vsel %vm232, %v223, 0.0
        %v234 = vld [vmem:[#allocation2] sm:$0x1]
        %v235 = vrot.slane %v233, 4
        %v236 = vadd.f32 %v233, %v235
        %v237 = vrot.slane %v236, 2
        %v238 = vadd.f32 %v236, %v237
        %v239 = vrot.slane %v238, 1
        %v240 = vadd.f32 %v238, %v239
        %v241 = vadd.f32 %v234, %v240
        %242 = vst [vmem:[#allocation2] sm:$0x1] %v241
        // Predicated region
        $region33: #{tpu_custom_call.1} parent=23 // pred_check
          %p243 = pneg %p148
        $region34: #{tpu_custom_call.1} parent=23 // pred_check_branch
          %245 = sbr.rel (%p243) target = $region36
        $region35: #{tpu_custom_call.1} parent=23 // pred_region
          %vm246 = vcmp.eq.s32.totalorder %v227, 0
          %v247 = vld [vmem:[#allocation2] sm:$0x1]
          %v249 = vlaneseq
          %v250 = vshrl.u32 %v249, 7
          %v251 = vsub.s32 0, %v250
          %v252 = vrot.slane %v247, %v251
          %v254 = vsel %vm246, %v252, 0.0
          %255 = vst [vmem:[%s146] sm:$0xff] %v254
        $region36: #{tpu_custom_call.1} parent=23 // pred_fallthru
          _
        %s256 = sand.u32 %s66, 1
        %s257 = scalar_lea.sflag [#allocation5], %s256
        %s258 = sand.u32 %s66, 1
        %s259 = smul.addr %s258, 8
        %s260 = scalar_lea.vmem [#allocation6], %s259
        // Predicated region
        $region37: #{tpu_custom_call.1} parent=23 // pred_check
          %p261 = pneg %p76
        $region38: #{tpu_custom_call.1} parent=23 // pred_check_branch
          %263 = sbr.rel (%p261) target = $region40
        $region39: #{tpu_custom_call.1} parent=23 // pred_region
          %s265 = ssub.s32 128, 128
          %266 = vsyncadd %s257, %s265
          %s267 = smul.addr %s22, 128
          %s268 = scalar_lea.hbm %s1, %s267
          %s270 = sshll.u32 %s260, 4
          %s271 = int_to_ptr.vmem [resolvable:$true] %s270
          %273 = dma.vmem_to_hbm [thread:$0]  %s271, 128, %s268, %s257
        $region40: #{tpu_custom_call.1} parent=23 // pred_fallthru
          _
      $region24: #{tpu_custom_call.1} parent=5 // pred_fallthru
        _
      %p274 = scmp.le.s32.totalorder 2, %s13
      // Predicated region
      $region41: #{tpu_custom_call.1} parent=5 // pred_check
        %p275 = pneg %p274
      $region42: #{tpu_custom_call.1} parent=5 // pred_check_branch
        %277 = sbr.rel (%p275) target = $region44
      $region43: #{tpu_custom_call.1} parent=5 // pred_region
        %s278 = ssub.s32 %s13, 2
        // Predicated region
        $region45: #{tpu_custom_call.1} parent=43 // pred_check
          %p279 = pneg %p82
        $region46: #{tpu_custom_call.1} parent=43 // pred_check_branch
          %281 = sbr.rel (%p279) target = $region48
        $region47: #{tpu_custom_call.1} parent=43 // pred_region
          %s282 = sand.u32 %s67, 1
          %s283 = scalar_lea.sflag [#allocation5], %s282
          %s284 = sand.u32 %s67, 1
          %s285 = smul.addr %s284, 8
          %s286 = scalar_lea.vmem [#allocation6], %s285
          %287 = dma.done %s283, 128
        $region48: #{tpu_custom_call.1} parent=43 // pred_fallthru
          _
      $region44: #{tpu_custom_call.1} parent=5 // pred_fallthru
        _
    $region6: #{tpu_custom_call.1} parent=1 // loop_footer
      %s17 = sadd.s32 1, %s13
    $region7: #{tpu_custom_call.1} parent=1 // loop_footer_branch
      %12 = sbr.rel target = $region3
    $region8: #{tpu_custom_call.1} parent=1 // loop_exit
      _
    %288 = vsyncpa [#allocation4], 1
    %s289 = scalar_lea.sflag [#allocation4], 1
    %290 = vsyncpa %s289, 1
    %291 = vsyncpa [#allocation5], 1
    %s292 = scalar_lea.sflag [#allocation5], 1
    %293 = vsyncpa %s292, 1

</llo_original>
